<compile_context>
chip_gen: v5e
topology: v5e:2x2
jax: 0.10.0
libtpu: 0.0.40
codegen_flags: <defaults>
</compile_context>

<pallas_src>
import functools

import jax
import jax.numpy as jnp
import numpy as np
from jax import lax
from jax.experimental import pallas as pl
from jax.experimental.pallas import tpu as pltpu


@functools.lru_cache(maxsize=1)
def _vmem_budget_bytes():
    """~75% of physical VMEM per core (96 MiB on v5e/v6e, 48 MiB on v7x)."""
    try:
        cap = int(pltpu.get_tpu_info().vmem_capacity_bytes)
    except Exception:
        cap = 64 * 1024 * 1024
    return (cap * 3) // 4


def _boundary_masks(H, W):
    """(4, H*W) f32 0/1 masks: [row di=-1 valid, row di=+1 valid, col dj=-1, col dj=+1]."""
    HW = H * W
    pos = jnp.arange(HW, dtype=jnp.int32)
    col = pos % W
    return jnp.stack(
        [pos >= W, pos < (H - 1) * W, col >= 1, col < (W - 1)], axis=0
    ).astype(jnp.float32)


def _attn_map_flat(avg, mx, w_ref, scale, masks, H, W):
    """sigmoid(conv3x3([avg; mx])) * scale on flattened (1, H*W) maps.

    avg, mx: (1, H*W) f32. w_ref: SMEM (18,) flattened (2,3,3) conv weights (cin 0 = avg,
    1 = max). masks: (4, H*W) f32 precomputed zero-padding boundary masks. The 3x3 "same"
    conv is 16 hoisted pltpu.roll taps (XLU) with the 0/1 mask folded in after each shift.
    """
    HW = H * W
    row_mask = {-1: masks[0:1, :], 1: masks[1:2, :]}
    col_mask = {-1: masks[2:3, :], 1: masks[3:4, :]}

    def w(cin, di, dj):
        return w_ref[cin * 9 + (di + 1) * 3 + (dj + 1)]

    acc = jnp.zeros((1, HW), jnp.float32)
    for di in (-1, 0, 1):
        if di == 0:
            a_d, m_d = avg, mx
        else:
            shift = (-(di * W)) % HW
            rm = row_mask[di]
            a_d = pltpu.roll(avg, shift, axis=1) * rm
            m_d = pltpu.roll(mx, shift, axis=1) * rm
        for dj in (-1, 0, 1):
            wa = w(0, di, dj)
            wm = w(1, di, dj)
            if dj == 0:
                acc = acc + (wa * a_d + wm * m_d)
            else:
                shift = (-dj) % HW
                a_s = pltpu.roll(a_d, shift, axis=1)
                m_s = pltpu.roll(m_d, shift, axis=1)
                acc = acc + (wa * a_s + wm * m_s) * col_mask[dj]
    return jax.nn.sigmoid(acc) * scale


# ---------------- fused single-pass path (slab fits VMEM) ----------------


def _fused_kernel(w_ref, scale_ref, masks_ref, x_ref, o_ref, *, H, W):
    xb = x_ref[...]                                               # (1, C, HW) native dtype
    avg = jnp.mean(xb, axis=1, dtype=jnp.float32)                 # (1, HW) f32
    mx = jnp.max(xb, axis=1).astype(jnp.float32)                  # (1, HW) f32
    attn = _attn_map_flat(avg, mx, w_ref, scale_ref[0], masks_ref[...], H, W)
    gate = attn.astype(xb.dtype)[:, None, :]                      # (1, 1, HW)
    o_ref[...] = (xb * gate).astype(o_ref.dtype)


def _fused_call(xf, w_flat, scale, masks, H, W, vmem_budget):
    B, C, HW = xf.shape
    itemsize = jnp.dtype(xf.dtype).itemsize
    kernel = functools.partial(_fused_kernel, H=H, W=W)
    return pl.pallas_call(
        kernel,
        out_shape=jax.ShapeDtypeStruct((B, C, HW), xf.dtype),
        grid=(B,),
        in_specs=[
            pl.BlockSpec(memory_space=pltpu.MemorySpace.SMEM),    # conv weights (18,)
            pl.BlockSpec(memory_space=pltpu.MemorySpace.SMEM),    # scale (1,)
            pl.BlockSpec((4, HW), lambda b: (0, 0)),              # boundary masks
            pl.BlockSpec((1, C, HW), lambda b: (b, 0, 0)),
        ],
        out_specs=pl.BlockSpec((1, C, HW), lambda b: (b, 0, 0)),
        compiler_params=pltpu.CompilerParams(
            dimension_semantics=("parallel",),
            vmem_limit_bytes=vmem_budget,
        ),
        cost_estimate=pl.CostEstimate(
            flops=int(B * HW * (3 * C + 40)),
            transcendentals=int(B * HW),
            bytes_accessed=int(2 * B * C * HW * itemsize + 4 * HW * 4),
        ),
    )(w_flat, scale, masks, xf)


# ---------------- tiled two-pass path (large feature maps) ----------------


def _attn_pass_kernel(w_ref, scale_ref, masks_ref, x_ref, attn_ref, sum_sc, max_sc,
                      *, H, W, C):
    c = pl.program_id(1)
    xb = x_ref[...]                                               # (1, Ct, HW)

    @pl.when(c == 0)
    def _():
        sum_sc[...] = jnp.zeros_like(sum_sc)
        max_sc[...] = jnp.full_like(max_sc, -jnp.inf)

    sum_sc[...] = sum_sc[...] + jnp.sum(xb, axis=1, dtype=jnp.float32)
    max_sc[...] = jnp.maximum(max_sc[...], jnp.max(xb, axis=1).astype(jnp.float32))

    @pl.when(c == pl.num_programs(1) - 1)
    def _():
        avg = sum_sc[...] * (1.0 / C)
        attn = _attn_map_flat(avg, max_sc[...], w_ref, scale_ref[0], masks_ref[...], H, W)
        attn_ref[0] = attn.astype(attn_ref.dtype)


def _attn_call(xf, w_flat, scale, masks, H, W, block_c, vmem_budget):
    B, C, HW = xf.shape
    nct = C // block_c
    itemsize = jnp.dtype(xf.dtype).itemsize
    kernel = functools.partial(_attn_pass_kernel, H=H, W=W, C=C)
    return pl.pallas_call(
        kernel,
        out_shape=jax.ShapeDtypeStruct((B, 1, HW), jnp.float32),
        grid=(B, nct),
        in_specs=[
            pl.BlockSpec(memory_space=pltpu.MemorySpace.SMEM),
            pl.BlockSpec(memory_space=pltpu.MemorySpace.SMEM),
            pl.BlockSpec((4, HW), lambda b, c: (0, 0)),
            pl.BlockSpec((1, block_c, HW), lambda b, c: (b, c, 0)),
        ],
        out_specs=pl.BlockSpec((1, 1, HW), lambda b, c: (b, 0, 0)),
        scratch_shapes=[
            pltpu.VMEM((1, HW), jnp.float32),   # running channel sum
            pltpu.VMEM((1, HW), jnp.float32),   # running channel max
        ],
        compiler_params=pltpu.CompilerParams(
            dimension_semantics=("parallel", "arbitrary"),
            vmem_limit_bytes=vmem_budget,
        ),
        cost_estimate=pl.CostEstimate(
            flops=int(B * HW * (2 * C + 40)),
            transcendentals=int(B * HW),
            bytes_accessed=int(B * C * HW * itemsize + B * HW * 4),
        ),
    )(w_flat, scale, masks, xf)


def _gate_kernel(x_ref, attn_ref, o_ref):
    gate = attn_ref[...].astype(x_ref.dtype)                      # (1, 1, HW)
    o_ref[...] = (x_ref[...] * gate).astype(o_ref.dtype)


def _gate_call(xf, attn, block_c, vmem_budget, in_place):
    B, C, HW = xf.shape
    nct = C // block_c
    itemsize = jnp.dtype(xf.dtype).itemsize
    return pl.pallas_call(
        _gate_kernel,
        out_shape=jax.ShapeDtypeStruct((B, C, HW), xf.dtype),
        grid=(B, nct),
        in_specs=[
            pl.BlockSpec((1, block_c, HW), lambda b, c: (b, c, 0)),
            pl.BlockSpec((1, 1, HW), lambda b, c: (b, 0, 0)),
        ],
        out_specs=pl.BlockSpec((1, block_c, HW), lambda b, c: (b, c, 0)),
        input_output_aliases={0: 0} if in_place else {},
        compiler_params=pltpu.CompilerParams(
            dimension_semantics=("parallel", "parallel"),
            vmem_limit_bytes=vmem_budget,
        ),
        cost_estimate=pl.CostEstimate(
            flops=int(B * C * HW),
            transcendentals=0,
            bytes_accessed=int(2 * B * C * HW * itemsize + B * HW * 4),
        ),
    )(xf, attn)


def _pick_block_c(C, cap, align):
    """Largest divisor of C that is <= cap; prefer `align`-multiples (or full C). Never > cap."""
    cap = max(1, min(C, int(cap)))
    best_aligned = 0
    best_any = 1
    for d in range(1, cap + 1):
        if C % d == 0:
            best_any = d
            if d % align == 0 or d == C:
                best_aligned = d
    return best_aligned if best_aligned else best_any


# ---------------- public wrapper ----------------


def spatial_attention(x, conv_w, weight, small_obj_bias, *, block_c=None,
                      force_tiled=False, gate_in_place=False):
    """x: (B, C, H, W); conv_w: (1, 2, 3, 3); weight / small_obj_bias: (1,)."""
    B, C, H, W = x.shape
    HW = H * W
    xf = x.reshape(B, C, HW)                                  # lane-dense: H*W on lanes
    w_flat = conv_w.reshape(18).astype(jnp.float32)           # 1-D SMEM layout
    scale = (weight + small_obj_bias).reshape(1).astype(jnp.float32)
    masks = _boundary_masks(H, W)                             # (4, HW) f32, hoisted out of kernel

    itemsize = jnp.dtype(x.dtype).itemsize
    budget = _vmem_budget_bytes()
    usable = int(0.9 * budget)
    slab_bytes = C * HW * itemsize
    # Fused path keeps in + out slabs double-buffered (4 slabs) plus small f32 stat/attn/mask
    # temporaries live per grid step.
    fused_live = 4 * slab_bytes + 48 * HW * 4
    use_fused = (not force_tiled) and fused_live <= usable

    if use_fused:
        out = _fused_call(xf, w_flat, scale, masks, H, W, budget)
    else:
        align = max(8, 32 // itemsize)                        # f32 -> 8, bf16 -> 16, int8 -> 32
        if block_c is not None:
            assert C % block_c == 0, "block_c must divide C"
            bc_attn = bc_gate = block_c
        else:
            fixed = 16 * HW * 4                               # masks + stat/attn f32 buffers
            # Pass 1: only the input strip is double-buffered.
            bc_attn = _pick_block_c(C, (usable - fixed) // max(1, 2 * HW * itemsize), align)
            # Pass 2: input + output strips double-buffered.
            bc_gate = _pick_block_c(C, (usable - fixed) // max(1, 4 * HW * itemsize), align)
        attn = _attn_call(xf, w_flat, scale, masks, H, W, bc_attn, budget)
        out = _gate_call(xf, attn, bc_gate, budget, gate_in_place)
    return out.reshape(B, C, H, W)


def spatial_attention_reference(x, conv_w, weight, small_obj_bias):
    avg = jnp.mean(x, axis=1, keepdims=True)
    mx = jnp.max(x, axis=1, keepdims=True)
    cat = jnp.concatenate([avg, mx], axis=1)
    conv = lax.conv_general_dilated(
        cat, conv_w, window_strides=(1, 1), padding="SAME",
        dimension_numbers=("NCHW", "OIHW", "NCHW"))
    attn = jax.nn.sigmoid(conv) * (weight + small_obj_bias)
    return x * attn


if __name__ == "__main__":
    key = jax.random.PRNGKey(0)
    kx, kw, kx2 = jax.random.split(key, 3)

    # Deterministic parameter init (shapes from the module's __init__).
    conv_w = jax.random.normal(kw, (1, 2, 3, 3), dtype=jnp.float32) * 0.1
    weight = jnp.ones((1,), jnp.float32)                 # nn.Parameter(torch.ones(1))
    small_obj_bias = jnp.ones((1,), jnp.float32) * 0.5   # nn.Parameter(torch.ones(1) * 0.5)

    # Test 1: small shape -> fused single-pass path.
    B, C, H, W = 2, 4, 16, 16
    x = jax.random.normal(kx, (B, C, H, W), dtype=jnp.float32)
    out = jax.block_until_ready(spatial_attention(x, conv_w, weight, small_obj_bias))
    ref = spatial_attention_reference(x, conv_w, weight, small_obj_bias)
    np.testing.assert_allclose(np.asarray(out), np.asarray(ref), rtol=1e-5, atol=1e-5)

    # Test 2: tiled two-pass path with explicit block_c (multi-step C reduction + gate).
    C2 = 16
    x2 = jax.random.normal(kx2, (B, C2, H, W), dtype=jnp.float32)
    out2 = jax.block_until_ready(
        spatial_attention(x2, conv_w, weight, small_obj_bias, force_tiled=True, block_c=8))
    ref2 = spatial_attention_reference(x2, conv_w, weight, small_obj_bias)
    np.testing.assert_allclose(np.asarray(out2), np.asarray(ref2), rtol=1e-5, atol=1e-5)

    # Test 3: tiled path with auto (pass-specific) block_c sizing.
    out3 = jax.block_until_ready(
        spatial_attention(x2, conv_w, weight, small_obj_bias, force_tiled=True))
    np.testing.assert_allclose(np.asarray(out3), np.asarray(ref2), rtol=1e-5, atol=1e-5)

    print("KERNEL_OK")
</pallas_src>

<mosaic_0001>
module attributes {stable_mosaic.version = 11 : i64} {
  func.func @_fused_kernel(%arg0: i32, %arg1: memref<18xf32, #tpu.memory_space<smem>>, %arg2: memref<1xf32, #tpu.memory_space<smem>>, %arg3: memref<4x256xf32, #tpu.memory_space<vmem>>, %arg4: memref<1x4x256xf32, #tpu.memory_space<vmem>>, %arg5: memref<1x4x256xf32, #tpu.memory_space<vmem>>) attributes {dimension_semantics = [#tpu.dimension_semantics<parallel>], iteration_bounds = array<i64: 2>, scalar_prefetch = 0 : i64, scratch_operands = 0 : i64, tpu.core_type = #tpu.core_type<tc>, window_params = [{transform_indices = @transform_0, window_bounds = array<i64: 18>}, {transform_indices = @transform_1, window_bounds = array<i64: 1>}, {pipeline_mode = #tpu.pipeline_mode<synchronous>, transform_indices = @transform_2, window_bounds = array<i64: 4, 256>}, {transform_indices = @transform_3, window_bounds = array<i64: 1, 4, 256>}, {transform_indices = @transform_4, window_bounds = array<i64: 1, 4, 256>}]} {
    %c0 = arith.constant 0 : index
    %c0_0 = arith.constant 0 : index
    %c0_1 = arith.constant 0 : index
    %0 = vector.load %arg4[%c0, %c0_0, %c0_1] : memref<1x4x256xf32, #tpu.memory_space<vmem>>, vector<1x4x256xf32>
    %cst = arith.constant dense<0.000000e+00> : vector<1x256xf32>
    %1 = vector.multi_reduction <add>, %0, %cst [1] : vector<1x4x256xf32> to vector<1x256xf32>
    %cst_2 = arith.constant 4.000000e+00 : f32
    %2 = vector.broadcast %cst_2 : f32 to vector<1x256xf32>
    %3 = arith.divf %1, %2 : vector<1x256xf32>
    %cst_3 = arith.constant dense<0xFF800000> : vector<1x256xf32>
    %4 = vector.multi_reduction <maximumf>, %0, %cst_3 [1] : vector<1x4x256xf32> to vector<1x256xf32>
    %c0_4 = arith.constant 0 : index
    %5 = memref.load %arg2[%c0_4] : memref<1xf32, #tpu.memory_space<smem>>
    %c0_5 = arith.constant 0 : index
    %c0_6 = arith.constant 0 : index
    %6 = vector.load %arg3[%c0_5, %c0_6] : memref<4x256xf32, #tpu.memory_space<vmem>>, vector<4x256xf32>
    %7 = vector.extract_strided_slice %6 {offsets = [0, 0], sizes = [1, 256], strides = [1, 1]} : vector<4x256xf32> to vector<1x256xf32>
    %8 = vector.extract_strided_slice %6 {offsets = [1, 0], sizes = [1, 256], strides = [1, 1]} : vector<4x256xf32> to vector<1x256xf32>
    %9 = vector.extract_strided_slice %6 {offsets = [2, 0], sizes = [1, 256], strides = [1, 1]} : vector<4x256xf32> to vector<1x256xf32>
    %10 = vector.extract_strided_slice %6 {offsets = [3, 0], sizes = [1, 256], strides = [1, 1]} : vector<4x256xf32> to vector<1x256xf32>
    %cst_7 = arith.constant 0.000000e+00 : f32
    %11 = vector.broadcast %cst_7 : f32 to vector<1x256xf32>
    %c16_i32 = arith.constant 16 : i32
    %12 = tpu.dynamic_rotate %3 by %c16_i32 dim 1 : vector<1x256xf32>, i32 -> vector<1x256xf32>
    %13 = arith.mulf %12, %7 : vector<1x256xf32>
    %c16_i32_8 = arith.constant 16 : i32
    %14 = tpu.dynamic_rotate %4 by %c16_i32_8 dim 1 : vector<1x256xf32>, i32 -> vector<1x256xf32>
    %15 = arith.mulf %14, %7 : vector<1x256xf32>
    %c0_9 = arith.constant 0 : index
    %16 = memref.load %arg1[%c0_9] : memref<18xf32, #tpu.memory_space<smem>>
    %c9 = arith.constant 9 : index
    %17 = memref.load %arg1[%c9] : memref<18xf32, #tpu.memory_space<smem>>
    %c1_i32 = arith.constant 1 : i32
    %18 = tpu.dynamic_rotate %13 by %c1_i32 dim 1 : vector<1x256xf32>, i32 -> vector<1x256xf32>
    %c1_i32_10 = arith.constant 1 : i32
    %19 = tpu.dynamic_rotate %15 by %c1_i32_10 dim 1 : vector<1x256xf32>, i32 -> vector<1x256xf32>
    %20 = vector.broadcast %16 : f32 to vector<1x256xf32>
    %21 = arith.mulf %20, %18 : vector<1x256xf32>
    %22 = vector.broadcast %17 : f32 to vector<1x256xf32>
    %23 = arith.mulf %22, %19 : vector<1x256xf32>
    %24 = arith.addf %21, %23 : vector<1x256xf32>
    %25 = arith.mulf %24, %9 : vector<1x256xf32>
    %26 = arith.addf %11, %25 : vector<1x256xf32>
    %c1 = arith.constant 1 : index
    %27 = memref.load %arg1[%c1] : memref<18xf32, #tpu.memory_space<smem>>
    %c10 = arith.constant 10 : index
    %28 = memref.load %arg1[%c10] : memref<18xf32, #tpu.memory_space<smem>>
    %29 = vector.broadcast %27 : f32 to vector<1x256xf32>
    %30 = arith.mulf %29, %13 : vector<1x256xf32>
    %31 = vector.broadcast %28 : f32 to vector<1x256xf32>
    %32 = arith.mulf %31, %15 : vector<1x256xf32>
    %33 = arith.addf %30, %32 : vector<1x256xf32>
    %34 = arith.addf %26, %33 : vector<1x256xf32>
    %c2 = arith.constant 2 : index
    %35 = memref.load %arg1[%c2] : memref<18xf32, #tpu.memory_space<smem>>
    %c11 = arith.constant 11 : index
    %36 = memref.load %arg1[%c11] : memref<18xf32, #tpu.memory_space<smem>>
    %c255_i32 = arith.constant 255 : i32
    %37 = tpu.dynamic_rotate %13 by %c255_i32 dim 1 : vector<1x256xf32>, i32 -> vector<1x256xf32>
    %c255_i32_11 = arith.constant 255 : i32
    %38 = tpu.dynamic_rotate %15 by %c255_i32_11 dim 1 : vector<1x256xf32>, i32 -> vector<1x256xf32>
    %39 = vector.broadcast %35 : f32 to vector<1x256xf32>
    %40 = arith.mulf %39, %37 : vector<1x256xf32>
    %41 = vector.broadcast %36 : f32 to vector<1x256xf32>
    %42 = arith.mulf %41, %38 : vector<1x256xf32>
    %43 = arith.addf %40, %42 : vector<1x256xf32>
    %44 = arith.mulf %43, %10 : vector<1x256xf32>
    %45 = arith.addf %34, %44 : vector<1x256xf32>
    %c3 = arith.constant 3 : index
    %46 = memref.load %arg1[%c3] : memref<18xf32, #tpu.memory_space<smem>>
    %c12 = arith.constant 12 : index
    %47 = memref.load %arg1[%c12] : memref<18xf32, #tpu.memory_space<smem>>
    %c1_i32_12 = arith.constant 1 : i32
    %48 = tpu.dynamic_rotate %3 by %c1_i32_12 dim 1 : vector<1x256xf32>, i32 -> vector<1x256xf32>
    %c1_i32_13 = arith.constant 1 : i32
    %49 = tpu.dynamic_rotate %4 by %c1_i32_13 dim 1 : vector<1x256xf32>, i32 -> vector<1x256xf32>
    %50 = vector.broadcast %46 : f32 to vector<1x256xf32>
    %51 = arith.mulf %50, %48 : vector<1x256xf32>
    %52 = vector.broadcast %47 : f32 to vector<1x256xf32>
    %53 = arith.mulf %52, %49 : vector<1x256xf32>
    %54 = arith.addf %51, %53 : vector<1x256xf32>
    %55 = arith.mulf %54, %9 : vector<1x256xf32>
    %56 = arith.addf %45, %55 : vector<1x256xf32>
    %c4 = arith.constant 4 : index
    %57 = memref.load %arg1[%c4] : memref<18xf32, #tpu.memory_space<smem>>
    %c13 = arith.constant 13 : index
    %58 = memref.load %arg1[%c13] : memref<18xf32, #tpu.memory_space<smem>>
    %59 = vector.broadcast %57 : f32 to vector<1x256xf32>
    %60 = arith.mulf %59, %3 : vector<1x256xf32>
    %61 = vector.broadcast %58 : f32 to vector<1x256xf32>
    %62 = arith.mulf %61, %4 : vector<1x256xf32>
    %63 = arith.addf %60, %62 : vector<1x256xf32>
    %64 = arith.addf %56, %63 : vector<1x256xf32>
    %c5 = arith.constant 5 : index
    %65 = memref.load %arg1[%c5] : memref<18xf32, #tpu.memory_space<smem>>
    %c14 = arith.constant 14 : index
    %66 = memref.load %arg1[%c14] : memref<18xf32, #tpu.memory_space<smem>>
    %c255_i32_14 = arith.constant 255 : i32
    %67 = tpu.dynamic_rotate %3 by %c255_i32_14 dim 1 : vector<1x256xf32>, i32 -> vector<1x256xf32>
    %c255_i32_15 = arith.constant 255 : i32
    %68 = tpu.dynamic_rotate %4 by %c255_i32_15 dim 1 : vector<1x256xf32>, i32 -> vector<1x256xf32>
    %69 = vector.broadcast %65 : f32 to vector<1x256xf32>
    %70 = arith.mulf %69, %67 : vector<1x256xf32>
    %71 = vector.broadcast %66 : f32 to vector<1x256xf32>
    %72 = arith.mulf %71, %68 : vector<1x256xf32>
    %73 = arith.addf %70, %72 : vector<1x256xf32>
    %74 = arith.mulf %73, %10 : vector<1x256xf32>
    %75 = arith.addf %64, %74 : vector<1x256xf32>
    %c240_i32 = arith.constant 240 : i32
    %76 = tpu.dynamic_rotate %3 by %c240_i32 dim 1 : vector<1x256xf32>, i32 -> vector<1x256xf32>
    %77 = arith.mulf %76, %8 : vector<1x256xf32>
    %c240_i32_16 = arith.constant 240 : i32
    %78 = tpu.dynamic_rotate %4 by %c240_i32_16 dim 1 : vector<1x256xf32>, i32 -> vector<1x256xf32>
    %79 = arith.mulf %78, %8 : vector<1x256xf32>
    %c6 = arith.constant 6 : index
    %80 = memref.load %arg1[%c6] : memref<18xf32, #tpu.memory_space<smem>>
    %c15 = arith.constant 15 : index
    %81 = memref.load %arg1[%c15] : memref<18xf32, #tpu.memory_space<smem>>
    %c1_i32_17 = arith.constant 1 : i32
    %82 = tpu.dynamic_rotate %77 by %c1_i32_17 dim 1 : vector<1x256xf32>, i32 -> vector<1x256xf32>
    %c1_i32_18 = arith.constant 1 : i32
    %83 = tpu.dynamic_rotate %79 by %c1_i32_18 dim 1 : vector<1x256xf32>, i32 -> vector<1x256xf32>
    %84 = vector.broadcast %80 : f32 to vector<1x256xf32>
    %85 = arith.mulf %84, %82 : vector<1x256xf32>
    %86 = vector.broadcast %81 : f32 to vector<1x256xf32>
    %87 = arith.mulf %86, %83 : vector<1x256xf32>
    %88 = arith.addf %85, %87 : vector<1x256xf32>
    %89 = arith.mulf %88, %9 : vector<1x256xf32>
    %90 = arith.addf %75, %89 : vector<1x256xf32>
    %c7 = arith.constant 7 : index
    %91 = memref.load %arg1[%c7] : memref<18xf32, #tpu.memory_space<smem>>
    %c16 = arith.constant 16 : index
    %92 = memref.load %arg1[%c16] : memref<18xf32, #tpu.memory_space<smem>>
    %93 = vector.broadcast %91 : f32 to vector<1x256xf32>
    %94 = arith.mulf %93, %77 : vector<1x256xf32>
    %95 = vector.broadcast %92 : f32 to vector<1x256xf32>
    %96 = arith.mulf %95, %79 : vector<1x256xf32>
    %97 = arith.addf %94, %96 : vector<1x256xf32>
    %98 = arith.addf %90, %97 : vector<1x256xf32>
    %c8 = arith.constant 8 : index
    %99 = memref.load %arg1[%c8] : memref<18xf32, #tpu.memory_space<smem>>
    %c17 = arith.constant 17 : index
    %100 = memref.load %arg1[%c17] : memref<18xf32, #tpu.memory_space<smem>>
    %c255_i32_19 = arith.constant 255 : i32
    %101 = tpu.dynamic_rotate %77 by %c255_i32_19 dim 1 : vector<1x256xf32>, i32 -> vector<1x256xf32>
    %c255_i32_20 = arith.constant 255 : i32
    %102 = tpu.dynamic_rotate %79 by %c255_i32_20 dim 1 : vector<1x256xf32>, i32 -> vector<1x256xf32>
    %103 = vector.broadcast %99 : f32 to vector<1x256xf32>
    %104 = arith.mulf %103, %101 : vector<1x256xf32>
    %105 = vector.broadcast %100 : f32 to vector<1x256xf32>
    %106 = arith.mulf %105, %102 : vector<1x256xf32>
    %107 = arith.addf %104, %106 : vector<1x256xf32>
    %108 = arith.mulf %107, %10 : vector<1x256xf32>
    %109 = arith.addf %98, %108 : vector<1x256xf32>
    %110 = arith.negf %109 : vector<1x256xf32>
    %111 = math.exp %110 : vector<1x256xf32>
    %cst_21 = arith.constant 1.000000e+00 : f32
    %112 = vector.broadcast %cst_21 : f32 to vector<1x256xf32>
    %113 = arith.addf %112, %111 : vector<1x256xf32>
    %114 = arith.divf %112, %113 : vector<1x256xf32>
    %115 = vector.broadcast %5 : f32 to vector<1x256xf32>
    %116 = arith.mulf %114, %115 : vector<1x256xf32>
    %117 = vector.shape_cast %116 : vector<1x256xf32> to vector<1x1x256xf32>
    %118 = vector.broadcast %117 : vector<1x1x256xf32> to vector<1x4x256xf32>
    %119 = arith.mulf %0, %118 : vector<1x4x256xf32>
    %c0_22 = arith.constant 0 : index
    %c0_23 = arith.constant 0 : index
    %c0_24 = arith.constant 0 : index
    %120 = vector.load %arg5[%c0_22, %c0_23, %c0_24] : memref<1x4x256xf32, #tpu.memory_space<vmem>>, vector<1x4x256xf32>
    tpu.vector_store %arg5[%c0_22, %c0_23, %c0_24], %119 {strides = array<i32>} : memref<1x4x256xf32, #tpu.memory_space<vmem>>, vector<1x4x256xf32>,
    return
  }
  func.func @transform_0(%arg0: i32) -> i32 {
    %c0_i32 = arith.constant 0 : i32
    %c0_i32_0 = arith.constant 0 : i32
    return %c0_i32 : i32
  }
  func.func @transform_1(%arg0: i32) -> i32 {
    %c0_i32 = arith.constant 0 : i32
    %c0_i32_0 = arith.constant 0 : i32
    return %c0_i32 : i32
  }
  func.func @transform_2(%arg0: i32) -> (i32, i32) {
    %c0_i32 = arith.constant 0 : i32
    %c0_i32_0 = arith.constant 0 : i32
    %c0_i32_1 = arith.constant 0 : i32
    return %c0_i32, %c0_i32_0 : i32, i32
  }
  func.func @transform_3(%arg0: i32) -> (i32, i32, i32) {
    %c0_i32 = arith.constant 0 : i32
    %c0_i32_0 = arith.constant 0 : i32
    %c0_i32_1 = arith.constant 0 : i32
    return %arg0, %c0_i32, %c0_i32_0 : i32, i32, i32
  }
  func.func @transform_4(%arg0: i32) -> (i32, i32, i32) {
    %c0_i32 = arith.constant 0 : i32
    %c0_i32_0 = arith.constant 0 : i32
    %c0_i32_1 = arith.constant 0 : i32
    return %arg0, %c0_i32, %c0_i32_0 : i32, i32, i32
  }
}

</mosaic_0001>

<llo_original>
// kernel: tpu_custom_call.1
$region0: #{tpu_custom_call.1}
  #allocation0 [shape = 'u32[]', space=smem, size = 0x4, offset = 0x4, fixed_abs, tag = 'smem constant byte address 0x4 - core index']
  #allocation1 [shape = 'u32[72,128]{1,0:T(1,128)}', space=vmem, size = 0x9000, scoped, tag = 'internal scratch']
  #allocation2 [shape = 'f32[1]{0:T(128)S(6)}', space=smem, size = 0x200, scoped, tag = 'scoped memory for tpu_custom_call.1']
  %s0 = inlined_call_operand.vmem [shape: f32[18], index: 0, kind: input, shape index: {}]
  %s1 = inlined_call_operand.<no memory space> [shape: f32[1], index: 1, kind: input, shape index: {}]
  %s2 = inlined_call_operand.hbm [shape: f32[4,256], index: 2, kind: input, shape index: {}]
  %s3 = inlined_call_operand.hbm [shape: f32[2,4,256], index: 3, kind: input, shape index: {}]
  %s4 = inlined_call_operand.hbm [shape: f32[2,4,256], index: 4, kind: output, shape index: {}]
  %s5 = sld [smem:[#allocation0]]
  $region61: #{tpu_custom_call.1} parent=0
    _
  %s7 = ssub.s32 1, %s5
  %s8 = scalar_select 0, %s7, %s5
  %9 = sst [smem:[#allocation2]] %s1
  $region1: #{tpu_custom_call.1} parent=0
    #allocation3 [shape = 'u8[512]{0}', space=smem, size = 0x200, scoped, tag = 'input window, operand 0, single buffered']
    #allocation4 [shape = 's32[2]{0}', space=sflag, size = 0x8, scoped, tag = 'scoped memory for tpu_custom_call.1']
    #allocation5 [shape = 's32[2]{0}', space=sflag, size = 0x8, scoped, tag = 'scoped memory for tpu_custom_call.1']
    #allocation6 [shape = 's32[2]{0}', space=sflag, size = 0x8, scoped, tag = 'scoped memory for tpu_custom_call.1']
    #allocation7 [shape = 'u8[4096]{0}', space=vmem, size = 0x1000, scoped, tag = 'input window, operand 2, single buffered']
    #allocation8 [shape = 'u8[8192]{0}', space=vmem, size = 0x2000, scoped, tag = 'input window, operand 3']
    #allocation9 [shape = 's32[2]{0}', space=sflag, size = 0x8, scoped, tag = 'scoped memory for tpu_custom_call.1']
    #allocation10 [shape = 'u8[8192]{0}', space=vmem, size = 0x2000, scoped, tag = 'output window, operand 0']
    %10 = vsyncpa [#allocation6], 0
    %11 = vsyncpa [#allocation4], 0
    %12 = vsyncpa [#allocation9], 0
    %s13 = scalar_lea.sflag [#allocation9], 1
    %14 = vsyncpa %s13, 0
    %15 = vsyncpa [#allocation5], 0
    %s16 = scalar_lea.sflag [#allocation5], 1
    %17 = vsyncpa %s16, 0
    loop: start=0, step=1, limit=4
    $region2: #{tpu_custom_call.1} parent=1 // loop_pre_header
      _
    $region3: #{tpu_custom_call.1} parent=1 // loop_header
      %s19 = sphi 0, %s23
      %p20 = scmp.ge.s32.totalorder %s19, 4
      %s27 = sphi 0, %s27
      %s29 = sphi 0, %s27
      %s30 = sphi 0, %s29
      %s44 = sphi 0, %s30
      %s48 = sphi 0, %s48
      %s50 = sphi 0, %s48
      %s51 = sphi 0, %s50
      %s65 = sphi 0, %s51
      %s69 = sphi 0, %s69
      %s71 = sphi 0, %s69
      %s72 = sphi 0, %s71
      %s86 = sphi 0, %s72
      %s92 = sphi 0, %s94
      %s95 = sphi 0, %s92
      %s96 = sphi 0, %s95
      %s112 = sphi 0, %s96
      %s118 = sphi 0, %s120
      %s121 = sphi 0, %s118
      %s122 = sphi 0, %s121
      %s138 = sphi 0, %s122
    $region4: #{tpu_custom_call.1} parent=1 // loop_header_branch
      %22 = sbr.rel (%p20) target = $region8
    $region5: #{tpu_custom_call.1} parent=1 // loop_body
      %s24 = ssub.s32 %s19, 1
      %s25 = ssub.s32 %s19, 2
      %s26 = sadd.s32 %s19, 1
      %s28 = sadd.s32 %s27, 1
      %p31 = scmp.eq.s32.totalorder %s19, 1
      %p32 = scmp.ne.s32.totalorder %s27, %s29
      %p33 = scmp.eq.s32.totalorder %s19, 0
      %p34 = por %p32, %p33
      %p35 = scmp.ne.s32.totalorder %s27, %s29
      %p36 = scmp.eq.s32.totalorder %s24, 1
      %p37 = por %p35, %p36
      %p38 = scmp.ne.s32.totalorder %s29, %s30
      %p39 = scmp.eq.s32.totalorder %s24, 0
      %p40 = por %p38, %p39
      %p41 = scmp.ne.s32.totalorder %s29, %s30
      %p42 = scmp.eq.s32.totalorder %s25, 1
      %p43 = por %p41, %p42
      %p45 = scmp.ne.s32.totalorder %s30, %s44
      %p46 = scmp.eq.s32.totalorder %s25, 0
      %p47 = por %p45, %p46
      %s49 = sadd.s32 %s48, 1
      %p52 = scmp.eq.s32.totalorder %s19, 1
      %p53 = scmp.ne.s32.totalorder %s48, %s50
      %p54 = scmp.eq.s32.totalorder %s19, 0
      %p55 = por %p53, %p54
      %p56 = scmp.ne.s32.totalorder %s48, %s50
      %p57 = scmp.eq.s32.totalorder %s24, 1
      %p58 = por %p56, %p57
      %p59 = scmp.ne.s32.totalorder %s50, %s51
      %p60 = scmp.eq.s32.totalorder %s24, 0
      %p61 = por %p59, %p60
      %p62 = scmp.ne.s32.totalorder %s50, %s51
      %p63 = scmp.eq.s32.totalorder %s25, 1
      %p64 = por %p62, %p63
      %p66 = scmp.ne.s32.totalorder %s51, %s65
      %p67 = scmp.eq.s32.totalorder %s25, 0
      %p68 = por %p66, %p67
      %s70 = sadd.s32 %s69, 1
      %p73 = scmp.eq.s32.totalorder %s19, 1
      %p74 = scmp.ne.s32.totalorder %s69, %s71
      %p75 = scmp.eq.s32.totalorder %s19, 0
      %p76 = por %p74, %p75
      %p77 = scmp.ne.s32.totalorder %s69, %s71
      %p78 = scmp.eq.s32.totalorder %s24, 1
      %p79 = por %p77, %p78
      %p80 = scmp.ne.s32.totalorder %s71, %s72
      %p81 = scmp.eq.s32.totalorder %s24, 0
      %p82 = por %p80, %p81
      %p83 = scmp.ne.s32.totalorder %s71, %s72
      %p84 = scmp.eq.s32.totalorder %s25, 1
      %p85 = por %p83, %p84
      %p87 = scmp.ne.s32.totalorder %s72, %s86
      %p88 = scmp.eq.s32.totalorder %s25, 0
      %p89 = por %p87, %p88
      %s90 = ssub.s32 %s19, %s26
      %p91 = scmp.eq.s32.totalorder %s90, 0
      %s93 = sadd.s32 %s92, 1
      %s94 = scalar_select %p91, %s92, %s93
      %p97 = pneg %p91
      %p98 = scmp.eq.s32.totalorder %s19, 1
      %p99 = por %p97, %p98
      %p100 = scmp.ne.s32.totalorder %s92, %s95
      %p101 = scmp.eq.s32.totalorder %s19, 0
      %p102 = por %p100, %p101
      %p103 = scmp.ne.s32.totalorder %s92, %s95
      %p104 = scmp.eq.s32.totalorder %s24, 1
      %p105 = por %p103, %p104
      %p106 = scmp.ne.s32.totalorder %s95, %s96
      %p107 = scmp.eq.s32.totalorder %s24, 0
      %p108 = por %p106, %p107
      %p109 = scmp.ne.s32.totalorder %s95, %s96
      %p110 = scmp.eq.s32.totalorder %s25, 1
      %p111 = por %p109, %p110
      %p113 = scmp.ne.s32.totalorder %s96, %s112
      %p114 = scmp.eq.s32.totalorder %s25, 0
      %p115 = por %p113, %p114
      %s116 = ssub.s32 %s19, %s26
      %p117 = scmp.eq.s32.totalorder %s116, 0
      %s119 = sadd.s32 %s118, 1
      %s120 = scalar_select %p117, %s118, %s119
      %p123 = pneg %p117
      %p124 = scmp.eq.s32.totalorder %s19, 1
      %p125 = por %p123, %p124
      %p126 = scmp.ne.s32.totalorder %s118, %s121
      %p127 = scmp.eq.s32.totalorder %s19, 0
      %p128 = por %p126, %p127
      %p129 = scmp.ne.s32.totalorder %s118, %s121
      %p130 = scmp.eq.s32.totalorder %s24, 1
      %p131 = por %p129, %p130
      %p132 = scmp.ne.s32.totalorder %s121, %s122
      %p133 = scmp.eq.s32.totalorder %s24, 0
      %p134 = por %p132, %p133
      %p135 = scmp.ne.s32.totalorder %s121, %s122
      %p136 = scmp.eq.s32.totalorder %s25, 1
      %p137 = por %p135, %p136
      %p139 = scmp.ne.s32.totalorder %s122, %s138
      %p140 = scmp.eq.s32.totalorder %s25, 0
      %p141 = por %p139, %p140
      %p142 = scmp.le.s32.totalorder 1, %s19
      %p143 = scmp.lt.s32.totalorder %s19, 3
      %p144 = pnand %p142, %p143
      %p145 = pneg %p144
      // Predicated region
      $region9: #{tpu_custom_call.1} parent=5 // pred_check
        _
      $region10: #{tpu_custom_call.1} parent=5 // pred_check_branch
        %147 = sbr.rel (%p144) target = $region12
      $region11: #{tpu_custom_call.1} parent=5 // pred_region
        %s148 = ssub.s32 %s19, 1
        // Predicated region
        $region13: #{tpu_custom_call.1} parent=11 // pred_check
          %p149 = pneg %p40
        $region14: #{tpu_custom_call.1} parent=11 // pred_check_branch
          %151 = sbr.rel (%p149) target = $region16
        $region15: #{tpu_custom_call.1} parent=11 // pred_region
          %153 = vsyncadd [#allocation6], 0
          %s155 = sshll.u32 %s0, 4
          %s156 = int_to_ptr.vmem [resolvable:$true] %s155
          %158 = dma.vmem_to_smem %s156, 16, [#allocation3], [#allocation6]
        $region16: #{tpu_custom_call.1} parent=11 // pred_fallthru
          _
        // Predicated region
        $region17: #{tpu_custom_call.1} parent=11 // pred_check
          %p159 = pneg %p61
        $region18: #{tpu_custom_call.1} parent=11 // pred_check_branch
          %161 = sbr.rel (%p159) target = $region20
        $region19: #{tpu_custom_call.1} parent=11 // pred_region
          _
        $region20: #{tpu_custom_call.1} parent=11 // pred_fallthru
          _
        // Predicated region
        $region21: #{tpu_custom_call.1} parent=11 // pred_check
          %p162 = pneg %p82
        $region22: #{tpu_custom_call.1} parent=11 // pred_check_branch
          %164 = sbr.rel (%p162) target = $region24
        $region23: #{tpu_custom_call.1} parent=11 // pred_region
          %166 = vsyncadd [#allocation4], 0
          %s168 = sshll.u32 %s2, 4
          %s169 = int_to_ptr.hbm [resolvable:$true] %s168
          %s170 = sshll.u32 [#allocation7], 4
          %s171 = int_to_ptr.vmem [resolvable:$true] %s170
          %173 = dma.hbm_to_vmem [thread:$0]  %s169, 128, %s171, [#allocation4]
        $region24: #{tpu_custom_call.1} parent=11 // pred_fallthru
          _
      $region12: #{tpu_custom_call.1} parent=5 // pred_fallthru
        _
      %p174 = scmp.lt.s32.totalorder %s19, 2
      // Predicated region
      $region25: #{tpu_custom_call.1} parent=5 // pred_check
        %p175 = pneg %p174
      $region26: #{tpu_custom_call.1} parent=5 // pred_check_branch
        %177 = sbr.rel (%p175) target = $region28
      $region27: #{tpu_custom_call.1} parent=5 // pred_region
        // Predicated region
        $region29: #{tpu_custom_call.1} parent=27 // pred_check
          %p178 = pneg %p102
        $region30: #{tpu_custom_call.1} parent=27 // pred_check_branch
          %180 = sbr.rel (%p178) target = $region32
        $region31: #{tpu_custom_call.1} parent=27 // pred_region
          %s181 = sand.u32 %s92, 1
          %s182 = scalar_lea.sflag [#allocation9], %s181
          %s183 = sand.u32 %s92, 1
          %s184 = smul.addr %s183, 8
          %s185 = scalar_lea.vmem [#allocation8], %s184
          %187 = vsyncadd %s182, 0
          %s188 = smul.addr %s19, 2
          %s189 = smul.addr %s188, 4
          %s190 = scalar_lea.hbm %s3, %s189
          %s192 = sshll.u32 %s190, 4
          %s193 = int_to_ptr.hbm [resolvable:$true] %s192
          %s194 = sshll.u32 %s185, 4
          %s195 = int_to_ptr.vmem [resolvable:$true] %s194
          %197 = dma.hbm_to_vmem [thread:$0]  %s193, 128, %s195, %s182
        $region32: #{tpu_custom_call.1} parent=27 // pred_fallthru
          _
      $region28: #{tpu_custom_call.1} parent=5 // pred_fallthru
        _
      %p198 = scmp.le.s32.totalorder 1, %s19
      %p199 = scmp.lt.s32.totalorder %s19, 3
      %p200 = pnand %p198, %p199
      %p201 = pneg %p200
      // Predicated region
      $region33: #{tpu_custom_call.1} parent=5 // pred_check
        _
      $region34: #{tpu_custom_call.1} parent=5 // pred_check_branch
        %203 = sbr.rel (%p200) target = $region36
      $region35: #{tpu_custom_call.1} parent=5 // pred_region
        %s204 = ssub.s32 %s19, 1
        // Predicated region
        $region37: #{tpu_custom_call.1} parent=35 // pred_check
          %p205 = pneg %p40
        $region38: #{tpu_custom_call.1} parent=35 // pred_check_branch
          %207 = sbr.rel (%p205) target = $region40
        $region39: #{tpu_custom_call.1} parent=35 // pred_region
          %209 = dma.done [#allocation6], 16
        $region40: #{tpu_custom_call.1} parent=35 // pred_fallthru
          _
        // Predicated region
        $region41: #{tpu_custom_call.1} parent=35 // pred_check
          %p210 = pneg %p82
        $region42: #{tpu_custom_call.1} parent=35 // pred_check_branch
          %212 = sbr.rel (%p210) target = $region44
        $region43: #{tpu_custom_call.1} parent=35 // pred_region
          %214 = dma.done [#allocation4], 128
        $region44: #{tpu_custom_call.1} parent=35 // pred_fallthru
          _
        %s215 = sand.u32 %s95, 1
        %s216 = scalar_lea.sflag [#allocation9], %s215
        %s217 = sand.u32 %s95, 1
        %s218 = smul.addr %s217, 8
        %s219 = scalar_lea.vmem [#allocation8], %s218
        // Predicated region
        $region45: #{tpu_custom_call.1} parent=35 // pred_check
          %p220 = pneg %p108
        $region46: #{tpu_custom_call.1} parent=35 // pred_check_branch
          %222 = sbr.rel (%p220) target = $region48
        $region47: #{tpu_custom_call.1} parent=35 // pred_region
          %224 = dma.done %s216, 128
        $region48: #{tpu_custom_call.1} parent=35 // pred_fallthru
          _
        %225 = sfence
        %p226 = pneg %p40
        %p227 = pneg %p37
        %p228 = pneg %p61
        %p229 = pneg %p58
        %p230 = pneg %p82
        %p231 = pneg %p79
        %s232 = sand.u32 %s95, 1
        %s233 = scalar_lea.sflag [#allocation9], %s232
        %s234 = sand.u32 %s95, 1
        %s235 = smul.addr %s234, 8
        %s236 = scalar_lea.vmem [#allocation8], %s235
        %p237 = pneg %p108
        %p238 = pneg %p105
        %p239 = pneg %p134
        %p240 = pneg %p131
        %s241 = sand.u32 %s121, 1
        %s242 = scalar_lea.sflag [#allocation5], %s241
        %s243 = sand.u32 %s121, 1
        %s244 = smul.addr %s243, 8
        %s245 = scalar_lea.vmem [#allocation10], %s244
        %v246 = vld [vmem:[%s219] sm:$0xff]
        %248 = vst [vmem:[#allocation1] ss:$2 sm:$0xff] %v246
        %v249 = vld.sshfl [vmem:[#allocation1] sm:$0xff pattern:$0x75316420]
        %v250 = vld.sshfl [vmem:[#allocation1 + $0x8] sm:$0xff pattern:$0x75316420]
        %vm253 = vcmask 1043456
        %v254 = vsel %vm253, %v249, 0.0
        %v255 = vrot.slane %v254, 4
        %v256 = vadd.f32 %v254, %v255
        %v257 = vrot.slane %v256, 2
        %v258 = vadd.f32 %v256, %v257
        %v259 = vrot.slane %v258, 1
        %v260 = vadd.f32 %v258, %v259
        %v261 = vsel %vm253, %v250, 0.0
        %v262 = vrot.slane %v261, 4
        %v263 = vadd.f32 %v261, %v262
        %v264 = vrot.slane %v263, 2
        %v265 = vadd.f32 %v263, %v264
        %v266 = vrot.slane %v265, 1
        %v267 = vadd.f32 %v265, %v266
        %v268 = vrcp.pop 4.0
        %v269 = vmul.f32 4.0, %v268
        %v270 = vsub.f32 1.0, %v269
        %v271 = vmul.f32 %v268, %v270
        %v272 = vadd.f32 %v268, %v271
        %vm273 = vweird.f32 %v268
        %v274 = vsel %vm273, %v268, %v272
        %v275 = vmul.f32 %v260, %v274
        %v276 = vmul.f32 %v267, %v274
        %277 = vst [vmem:[#allocation1] ss:$2 sm:$0xff] %v246
        %v278 = vld.sshfl [vmem:[#allocation1] sm:$0xff pattern:$0x75316420]
        %v279 = vld.sshfl [vmem:[#allocation1 + $0x8] sm:$0xff pattern:$0x75316420]
        %v282 = vsel %vm253, %v278, -inf
        %v283 = vrot.slane %v282, 4
        %v284 = vmax.f32 %v282, %v283
        %v285 = vrot.slane %v284, 2
        %v286 = vmax.f32 %v284, %v285
        %v287 = vrot.slane %v286, 1
        %v288 = vmax.f32 %v286, %v287
        %v289 = vsel %vm253, %v279, -inf
        %v290 = vrot.slane %v289, 4
        %v291 = vmax.f32 %v289, %v290
        %v292 = vrot.slane %v291, 2
        %v293 = vmax.f32 %v291, %v292
        %v294 = vrot.slane %v293, 1
        %v295 = vmax.f32 %v293, %v294
        %s296 = sld [smem:[#allocation2]]
        %v297 = vld [vmem:[#allocation7] sm:$0xff]
        %298 = vrot.lane.b32.xlu0 %v275, 16
        %v299 = vpop.permute.xlu0 %298
        %300 = vrot.lane.b32.xlu0 %v276, 16
        %v301 = vpop.permute.xlu0 %300
        %v302 = vlaneseq
        %v303 = vand.u32 %v302, 127
        %vm304 = vcmp.lt.s32.totalorder %v303, 16
        %v305 = vsel %vm304, %v299, %v301
        %v306 = vsel %vm304, %v301, %v299
        %v308 = vperm.slane %v297, 0
        %v309 = vperm.slane %v297, 4
        %v312 = vmul.f32 %v306, %v308
        %v313 = vmul.f32 %v305, %v309
        %314 = vrot.lane.b32.xlu0 %v288, 16
        %v315 = vpop.permute.xlu0 %314
        %316 = vrot.lane.b32.xlu0 %v295, 16
        %v317 = vpop.permute.xlu0 %316
        %v318 = vsel %vm304, %v315, %v317
        %v319 = vsel %vm304, %v317, %v315
        %v320 = vmul.f32 %v319, %v308
        %v321 = vmul.f32 %v318, %v309
        %s322 = sld [smem:[#allocation3]]
        %s323 = sld [smem:[#allocation3 + $0x9]]
        %324 = vrot.lane.b32.xlu0 %v312, 1
        %v325 = vpop.permute.xlu0 %324
        %326 = vrot.lane.b32.xlu0 %v313, 1
        %v327 = vpop.permute.xlu0 %326
        %vm328 = vcmp.lt.s32.totalorder %v303, 1
        %v329 = vsel %vm328, %v325, %v327
        %v330 = vsel %vm328, %v327, %v325
        %331 = vrot.lane.b32.xlu0 %v320, 1
        %v332 = vpop.permute.xlu0 %331
        %333 = vrot.lane.b32.xlu0 %v321, 1
        %v334 = vpop.permute.xlu0 %333
        %v335 = vsel %vm328, %v332, %v334
        %v336 = vsel %vm328, %v334, %v332
        %v337 = vstv %s322
        %v338 = vmul.f32 %v337, %v330
        %v339 = vmul.f32 %v337, %v329
        %v340 = vstv %s323
        %v341 = vmul.f32 %v340, %v336
        %v342 = vmul.f32 %v340, %v335
        %v343 = vadd.f32 %v338, %v341
        %v344 = vadd.f32 %v339, %v342
        %v345 = vperm.slane %v297, 2
        %v346 = vperm.slane %v297, 6
        %v349 = vmul.f32 %v343, %v345
        %v350 = vmul.f32 %v344, %v346
        %v351 = vadd.f32 %v349, 0.0
        %v352 = vadd.f32 %v350, 0.0
        %s353 = sld [smem:[#allocation3 + $0x1]]
        %s354 = sld [smem:[#allocation3 + $0xa]]
        %v355 = vstv %s353
        %v356 = vmul.f32 %v355, %v312
        %v357 = vmul.f32 %v355, %v313
        %v358 = vstv %s354
        %v359 = vmul.f32 %v358, %v320
        %v360 = vmul.f32 %v358, %v321
        %v361 = vadd.f32 %v356, %v359
        %v362 = vadd.f32 %v357, %v360
        %v363 = vadd.f32 %v351, %v361
        %v364 = vadd.f32 %v352, %v362
        %s365 = sld [smem:[#allocation3 + $0x2]]
        %s366 = sld [smem:[#allocation3 + $0xb]]
        %367 = vrot.lane.b32.xlu0 %v312, 127
        %v368 = vpop.permute.xlu0 %367
        %369 = vrot.lane.b32.xlu0 %v313, 127
        %v370 = vpop.permute.xlu0 %369
        %vm371 = vcmp.lt.s32.totalorder %v303, 127
        %v372 = vsel %vm371, %v368, %v370
        %v373 = vsel %vm371, %v370, %v368
        %374 = vrot.lane.b32.xlu0 %v320, 127
        %v375 = vpop.permute.xlu0 %374
        %376 = vrot.lane.b32.xlu0 %v321, 127
        %v377 = vpop.permute.xlu0 %376
        %v378 = vsel %vm371, %v375, %v377
        %v379 = vsel %vm371, %v377, %v375
        %v380 = vstv %s365
        %v381 = vmul.f32 %v380, %v372
        %v382 = vmul.f32 %v380, %v373
        %v383 = vstv %s366
        %v384 = vmul.f32 %v383, %v378
        %v385 = vmul.f32 %v383, %v379
        %v386 = vadd.f32 %v381, %v384
        %v387 = vadd.f32 %v382, %v385
        %v388 = vperm.slane %v297, 3
        %v389 = vperm.slane %v297, 7
        %v392 = vmul.f32 %v386, %v388
        %v393 = vmul.f32 %v387, %v389
        %v394 = vadd.f32 %v363, %v392
        %v395 = vadd.f32 %v364, %v393
        %s396 = sld [smem:[#allocation3 + $0x3]]
        %s397 = sld [smem:[#allocation3 + $0xc]]
        %398 = vrot.lane.b32.xlu0 %v275, 1
        %v399 = vpop.permute.xlu0 %398
        %400 = vrot.lane.b32.xlu0 %v276, 1
        %v401 = vpop.permute.xlu0 %400
        %v402 = vsel %vm328, %v399, %v401
        %v403 = vsel %vm328, %v401, %v399
        %404 = vrot.lane.b32.xlu0 %v288, 1
        %v405 = vpop.permute.xlu0 %404
        %406 = vrot.lane.b32.xlu0 %v295, 1
        %v407 = vpop.permute.xlu0 %406
        %v408 = vsel %vm328, %v405, %v407
        %v409 = vsel %vm328, %v407, %v405
        %v410 = vstv %s396
        %v411 = vmul.f32 %v410, %v403
        %v412 = vmul.f32 %v410, %v402
        %v413 = vstv %s397
        %v414 = vmul.f32 %v413, %v409
        %v415 = vmul.f32 %v413, %v408
        %v416 = vadd.f32 %v411, %v414
        %v417 = vadd.f32 %v412, %v415
        %v418 = vmul.f32 %v416, %v345
        %v419 = vmul.f32 %v417, %v346
        %v420 = vadd.f32 %v394, %v418
        %v421 = vadd.f32 %v395, %v419
        %s422 = sld [smem:[#allocation3 + $0x4]]
        %s423 = sld [smem:[#allocation3 + $0xd]]
        %v424 = vstv %s422
        %v425 = vmul.f32 %v424, %v275
        %v426 = vmul.f32 %v424, %v276
        %v427 = vstv %s423
        %v428 = vmul.f32 %v427, %v288
        %v429 = vmul.f32 %v427, %v295
        %v430 = vadd.f32 %v425, %v428
        %v431 = vadd.f32 %v426, %v429
        %v432 = vadd.f32 %v420, %v430
        %v433 = vadd.f32 %v421, %v431
        %s434 = sld [smem:[#allocation3 + $0x5]]
        %s435 = sld [smem:[#allocation3 + $0xe]]
        %436 = vrot.lane.b32.xlu0 %v275, 127
        %v437 = vpop.permute.xlu0 %436
        %438 = vrot.lane.b32.xlu0 %v276, 127
        %v439 = vpop.permute.xlu0 %438
        %v440 = vsel %vm371, %v437, %v439
        %v441 = vsel %vm371, %v439, %v437
        %442 = vrot.lane.b32.xlu0 %v288, 127
        %v443 = vpop.permute.xlu0 %442
        %444 = vrot.lane.b32.xlu0 %v295, 127
        %v445 = vpop.permute.xlu0 %444
        %v446 = vsel %vm371, %v443, %v445
        %v447 = vsel %vm371, %v445, %v443
        %v448 = vstv %s434
        %v449 = vmul.f32 %v448, %v440
        %v450 = vmul.f32 %v448, %v441
        %v451 = vstv %s435
        %v452 = vmul.f32 %v451, %v446
        %v453 = vmul.f32 %v451, %v447
        %v454 = vadd.f32 %v449, %v452
        %v455 = vadd.f32 %v450, %v453
        %v456 = vmul.f32 %v454, %v388
        %v457 = vmul.f32 %v455, %v389
        %v458 = vadd.f32 %v432, %v456
        %v459 = vadd.f32 %v433, %v457
        %460 = vrot.lane.b32.xlu0 %v275, 112
        %v461 = vpop.permute.xlu0 %460
        %462 = vrot.lane.b32.xlu0 %v276, 112
        %v463 = vpop.permute.xlu0 %462
        %vm464 = vcmp.lt.s32.totalorder %v303, 112
        %v465 = vsel %vm464, %v461, %v463
        %v466 = vsel %vm464, %v463, %v461
        %v467 = vperm.slane %v297, 1
        %v468 = vperm.slane %v297, 5
        %v471 = vmul.f32 %v465, %v467
        %v472 = vmul.f32 %v466, %v468
        %473 = vrot.lane.b32.xlu0 %v288, 112
        %v474 = vpop.permute.xlu0 %473
        %475 = vrot.lane.b32.xlu0 %v295, 112
        %v476 = vpop.permute.xlu0 %475
        %v477 = vsel %vm464, %v474, %v476
        %v478 = vsel %vm464, %v476, %v474
        %v479 = vmul.f32 %v477, %v467
        %v480 = vmul.f32 %v478, %v468
        %s481 = sld [smem:[#allocation3 + $0x6]]
        %s482 = sld [smem:[#allocation3 + $0xf]]
        %483 = vrot.lane.b32.xlu0 %v471, 1
        %v484 = vpop.permute.xlu0 %483
        %485 = vrot.lane.b32.xlu0 %v472, 1
        %v486 = vpop.permute.xlu0 %485
        %v487 = vsel %vm328, %v484, %v486
        %v488 = vsel %vm328, %v486, %v484
        %489 = vrot.lane.b32.xlu0 %v479, 1
        %v490 = vpop.permute.xlu0 %489
        %491 = vrot.lane.b32.xlu0 %v480, 1
        %v492 = vpop.permute.xlu0 %491
        %v493 = vsel %vm328, %v490, %v492
        %v494 = vsel %vm328, %v492, %v490
        %v495 = vstv %s481
        %v496 = vmul.f32 %v495, %v488
        %v497 = vmul.f32 %v495, %v487
        %v498 = vstv %s482
        %v499 = vmul.f32 %v498, %v494
        %v500 = vmul.f32 %v498, %v493
        %v501 = vadd.f32 %v496, %v499
        %v502 = vadd.f32 %v497, %v500
        %v503 = vmul.f32 %v501, %v345
        %v504 = vmul.f32 %v502, %v346
        %v505 = vadd.f32 %v458, %v503
        %v506 = vadd.f32 %v459, %v504
        %s507 = sld [smem:[#allocation3 + $0x7]]
        %s508 = sld [smem:[#allocation3 + $0x10]]
        %v509 = vstv %s507
        %v510 = vmul.f32 %v509, %v471
        %v511 = vmul.f32 %v509, %v472
        %v512 = vstv %s508
        %v513 = vmul.f32 %v512, %v479
        %v514 = vmul.f32 %v512, %v480
        %v515 = vadd.f32 %v510, %v513
        %v516 = vadd.f32 %v511, %v514
        %v517 = vadd.f32 %v505, %v515
        %v518 = vadd.f32 %v506, %v516
        %s519 = sld [smem:[#allocation3 + $0x8]]
        %s520 = sld [smem:[#allocation3 + $0x11]]
        %521 = vrot.lane.b32.xlu0 %v471, 127
        %v522 = vpop.permute.xlu0 %521
        %523 = vrot.lane.b32.xlu0 %v472, 127
        %v524 = vpop.permute.xlu0 %523
        %v525 = vsel %vm371, %v522, %v524
        %v526 = vsel %vm371, %v524, %v522
        %527 = vrot.lane.b32.xlu0 %v479, 127
        %v528 = vpop.permute.xlu0 %527
        %529 = vrot.lane.b32.xlu0 %v480, 127
        %v530 = vpop.permute.xlu0 %529
        %v531 = vsel %vm371, %v528, %v530
        %v532 = vsel %vm371, %v530, %v528
        %v533 = vstv %s519
        %v534 = vmul.f32 %v533, %v525
        %v535 = vmul.f32 %v533, %v526
        %v536 = vstv %s520
        %v537 = vmul.f32 %v536, %v531
        %v538 = vmul.f32 %v536, %v532
        %v539 = vadd.f32 %v534, %v537
        %v540 = vadd.f32 %v535, %v538
        %v541 = vmul.f32 %v539, %v388
        %v542 = vmul.f32 %v540, %v389
        %v543 = vadd.f32 %v517, %v541
        %v544 = vadd.f32 %v518, %v542
        %v545 = vxor.u32 %v543, 2147483648
        %v546 = vxor.u32 %v544, 2147483648
        %v547 = vmul.f32 %v545, 1.442695
        %v548 = vpow.pop %v547
        %v549 = vmul.f32 %v546, 1.442695
        %v550 = vpow.pop %v549
        %v551 = vadd.f32 %v548, 1.0
        %v552 = vadd.f32 %v550, 1.0
        %v553 = vrcp.pop %v551
        %v554 = vmul.f32 %v551, %v553
        %v555 = vsub.f32 1.0, %v554
        %v556 = vmul.f32 %v553, %v555
        %v557 = vadd.f32 %v553, %v556
        %vm558 = vweird.f32 %v551
        %vm559 = vweird.f32 %v553
        %vm560 = vmor %vm558, %vm559
        %v561 = vsel %vm560, %v553, %v557
        %v562 = vand.u32 2147483647, %v551
        %vm563 = vcmp.eq.f32.partialorder %v562, 8.507059e+37
        %v564 = vand.u32 %v551, 2147483648
        %v565 = vor.u32 1.1754944e-38, %v564
        %v566 = vsel %vm563, %v565, %v561
        %v567 = vmul.f32 1.0, %v566
        %v568 = vrcp.pop %v552
        %v569 = vmul.f32 %v552, %v568
        %v570 = vsub.f32 1.0, %v569
        %v571 = vmul.f32 %v568, %v570
        %v572 = vadd.f32 %v568, %v571
        %vm573 = vweird.f32 %v552
        %vm574 = vweird.f32 %v568
        %vm575 = vmor %vm573, %vm574
        %v576 = vsel %vm575, %v568, %v572
        %v577 = vand.u32 2147483647, %v552
        %vm578 = vcmp.eq.f32.partialorder %v577, 8.507059e+37
        %v579 = vand.u32 %v552, 2147483648
        %v580 = vor.u32 1.1754944e-38, %v579
        %v581 = vsel %vm578, %v580, %v576
        %v582 = vmul.f32 1.0, %v581
        %v583 = vstv %s296
        %v584 = vmul.f32 %v567, %v583
        %v585 = vmul.f32 %v582, %v583
        %v586 = vperm.slane %v584, 0
        %v587 = vperm.slane %v585, 0
        %v590 = vrot.slane %v587, 4
        %v591 = vsel %vm253, %v586, %v590
        %v593 = vmul.f32 %v246, %v591
        %594 = vst [vmem:[%s245] sm:$0xff] %v593
        %s595 = sand.u32 %s121, 1
        %s596 = scalar_lea.sflag [#allocation5], %s595
        %s597 = sand.u32 %s121, 1
        %s598 = smul.addr %s597, 8
        %s599 = scalar_lea.vmem [#allocation10], %s598
        // Predicated region
        $region49: #{tpu_custom_call.1} parent=35 // pred_check
          %p600 = pneg %p131
        $region50: #{tpu_custom_call.1} parent=35 // pred_check_branch
          %602 = sbr.rel (%p600) target = $region52
        $region51: #{tpu_custom_call.1} parent=35 // pred_region
          %604 = vsyncadd %s596, 0
          %s605 = smul.addr %s24, 2
          %s606 = smul.addr %s605, 4
          %s607 = scalar_lea.hbm %s4, %s606
          %s609 = sshll.u32 %s599, 4
          %s610 = int_to_ptr.vmem [resolvable:$true] %s609
          %s611 = sshll.u32 %s607, 4
          %s612 = int_to_ptr.hbm [resolvable:$true] %s611
          %614 = dma.vmem_to_hbm [thread:$0]  %s610, 128, %s612, %s596
        $region52: #{tpu_custom_call.1} parent=35 // pred_fallthru
          _
      $region36: #{tpu_custom_call.1} parent=5 // pred_fallthru
        _
      %p615 = scmp.le.s32.totalorder 2, %s19
      // Predicated region
      $region53: #{tpu_custom_call.1} parent=5 // pred_check
        %p616 = pneg %p615
      $region54: #{tpu_custom_call.1} parent=5 // pred_check_branch
        %618 = sbr.rel (%p616) target = $region56
      $region55: #{tpu_custom_call.1} parent=5 // pred_region
        %s619 = ssub.s32 %s19, 2
        // Predicated region
        $region57: #{tpu_custom_call.1} parent=55 // pred_check
          %p620 = pneg %p137
        $region58: #{tpu_custom_call.1} parent=55 // pred_check_branch
          %622 = sbr.rel (%p620) target = $region60
        $region59: #{tpu_custom_call.1} parent=55 // pred_region
          %s623 = sand.u32 %s122, 1
          %s624 = scalar_lea.sflag [#allocation5], %s623
          %s625 = sand.u32 %s122, 1
          %s626 = smul.addr %s625, 8
          %s627 = scalar_lea.vmem [#allocation10], %s626
          %629 = dma.done %s624, 128
        $region60: #{tpu_custom_call.1} parent=55 // pred_fallthru
          _
      $region56: #{tpu_custom_call.1} parent=5 // pred_fallthru
        _
    $region6: #{tpu_custom_call.1} parent=1 // loop_footer
      %s23 = sadd.s32 1, %s19
    $region7: #{tpu_custom_call.1} parent=1 // loop_footer_branch
      %18 = sbr.rel target = $region3
    $region8: #{tpu_custom_call.1} parent=1 // loop_exit
      _
    %630 = vsyncpa [#allocation4], 1
    %s631 = scalar_lea.sflag [#allocation4], 1
    %632 = vsyncpa %s631, 1
    %633 = vsyncpa [#allocation9], 1
    %s634 = scalar_lea.sflag [#allocation9], 1
    %635 = vsyncpa %s634, 1
    %636 = vsyncpa [#allocation5], 1
    %s637 = scalar_lea.sflag [#allocation5], 1
    %638 = vsyncpa %s637, 1
    %639 = vsyncpa [#allocation6], 1
    %s640 = scalar_lea.sflag [#allocation6], 1
    %641 = vsyncpa %s640, 1

</llo_original>
